<compile_context>
chip_gen: v5e
topology: v5e:2x2
jax: 0.10.0
libtpu: 0.0.40
codegen_flags: <defaults>
</compile_context>

<pallas_src>
import math

import jax
import jax.numpy as jnp
from jax.experimental import pallas as pl
from jax.experimental.pallas import tpu as pltpu


# ---------------------------------------------------------------------------
# Kernel
# ---------------------------------------------------------------------------
def _mlp_kernel(x_ref, w1_ref, b1_ref, w2_ref, b2_ref,
                w3_ref, b3_ref, w4_ref, b4_ref,
                pred_ref, feat_ref):
    # x tile: (tm, K) f32 straight from HBM; cast to bf16 in-kernel (VPU slack).
    # Weights bf16, biases f32, MXU accumulation f32, elementwise math f32.
    x = x_ref[...].astype(jnp.bfloat16)

    # K = 40 contraction: Mosaic masks the ragged contracting dim internally.
    h1 = jnp.dot(x, w1_ref[...], preferred_element_type=jnp.float32) + b1_ref[...]
    h1 = jnp.maximum(h1, 0.0)

    feat = jnp.dot(h1.astype(jnp.bfloat16), w2_ref[...],
                   preferred_element_type=jnp.float32) + b2_ref[...]
    feat = jnp.maximum(feat, 0.0)

    h3 = jnp.dot(feat.astype(jnp.bfloat16), w3_ref[...],
                 preferred_element_type=jnp.float32) + b3_ref[...]
    h3 = jnp.maximum(h3, 0.0)

    # Final 256 -> 1 projection: VPU multiply + XLU lane reduction (avoids a
    # one-lane MXU pass).  w4_ref is a (1, 256) f32 row, b4_ref is (1, 1).
    z = jnp.sum(h3 * w4_ref[...], axis=-1, keepdims=True) + b4_ref[...]

    # (tm, 1) pred store is lane-sparse but tiny; only a v5e epilogue nit.
    pred_ref[...] = jax.nn.sigmoid(z)
    feat_ref[...] = feat.astype(feat_ref.dtype)


# ---------------------------------------------------------------------------
# Wrapper
# ---------------------------------------------------------------------------
def _round_up(x, m):
    return ((x + m - 1) // m) * m


def linear_model_forward(x, kparams, *, tm=1024, feature_dtype=jnp.bfloat16):
    """x: (B, in_feats) f32, unpadded.  kparams: output of prepare_kernel_params().

    Returns (pred (B,1) f32, feature (B,hid) feature_dtype) with no padding or
    post-call slicing; the ragged final batch block is masked by Pallas.
    """
    B, K = x.shape
    hid = kparams["w2"].shape[1]            # 256

    # Batch-tile: multiple of 8 (sublane), no larger than the (rounded-up) batch.
    tm = max(8, min(tm, _round_up(B, 8)))
    grid = (pl.cdiv(B, tm),)

    row_map = lambda i: (i, 0)              # batch-tiled operands
    fix_map = lambda i: (0, 0)              # constant block -> VMEM-resident

    in_specs = [
        pl.BlockSpec((tm, K), row_map),                     # x (K == full dim)
        pl.BlockSpec(kparams["w1"].shape, fix_map),         # w1 (K, hid)
        pl.BlockSpec((1, hid), fix_map),                    # b1
        pl.BlockSpec((hid, hid), fix_map),                  # w2
        pl.BlockSpec((1, hid), fix_map),                    # b2
        pl.BlockSpec((hid, hid), fix_map),                  # w3
        pl.BlockSpec((1, hid), fix_map),                    # b3
        pl.BlockSpec((1, hid), fix_map),                    # w4 (row)
        pl.BlockSpec((1, 1), fix_map),                      # b4
    ]
    out_specs = (
        pl.BlockSpec((tm, 1), row_map),                     # pred
        pl.BlockSpec((tm, hid), row_map),                   # feature
    )
    out_shape = (
        jax.ShapeDtypeStruct((B, 1), jnp.float32),
        jax.ShapeDtypeStruct((B, hid), feature_dtype),
    )

    feat_bytes = jnp.dtype(feature_dtype).itemsize
    weight_bytes = (K * hid + 2 * hid * hid) * 2 + (4 * hid + 1) * 4
    cost = pl.CostEstimate(
        flops=2 * B * (K * hid + 2 * hid * hid + hid),
        transcendentals=B,
        bytes_accessed=B * K * 4 + weight_bytes + B * (hid * feat_bytes + 4),
    )

    pred, feat = pl.pallas_call(
        _mlp_kernel,
        out_shape=out_shape,
        grid=grid,
        in_specs=in_specs,
        out_specs=out_specs,
        compiler_params=pltpu.CompilerParams(
            dimension_semantics=("parallel",),
            vmem_limit_bytes=32 * 1024 * 1024,
        ),
        cost_estimate=cost,
    )(
        x,
        kparams["w1"], kparams["b1"],
        kparams["w2"], kparams["b2"],
        kparams["w3"], kparams["b3"],
        kparams["w4"], kparams["b4"],
    )
    return pred, feat


# ---------------------------------------------------------------------------
# Parameters
# ---------------------------------------------------------------------------
def _init_linear(key, fan_in, fan_out):
    """nn.Linear default init (uniform +/- 1/sqrt(fan_in)); W stored (in, out)."""
    kw, kb = jax.random.split(key)
    bound = 1.0 / math.sqrt(fan_in)
    w = jax.random.uniform(kw, (fan_in, fan_out), jnp.float32, -bound, bound)
    b = jax.random.uniform(kb, (1, fan_out), jnp.float32, -bound, bound)
    return w, b


def make_params(key, sample_feats=10, col_feats=10, join_feats=10, hid_units=256):
    in_feats = sample_feats + col_feats * 2 + join_feats
    k1, k2, k3, k4 = jax.random.split(key, 4)
    w1, b1 = _init_linear(k1, in_feats, hid_units)   # rep_mlp1
    w2, b2 = _init_linear(k2, hid_units, hid_units)  # rep_mlp2
    w3, b3 = _init_linear(k3, hid_units, hid_units)  # reg_mlp1
    w4, b4 = _init_linear(k4, hid_units, 1)          # reg_mlp2
    return dict(w1=w1, b1=b1, w2=w2, b2=b2, w3=w3, b3=b3, w4=w4, b4=b4)


def prepare_kernel_params(params):
    """Cast matmul weights to bf16 (no K padding); store w4 as a (1, hid) f32 row."""
    return dict(
        w1=params["w1"].astype(jnp.bfloat16), b1=params["b1"],
        w2=params["w2"].astype(jnp.bfloat16), b2=params["b2"],
        w3=params["w3"].astype(jnp.bfloat16), b3=params["b3"],
        w4=params["w4"].T,          # (1, hid) f32 row for the VPU/XLU projection
        b4=params["b4"],            # (1, 1)
    )


# ---------------------------------------------------------------------------
# References
# ---------------------------------------------------------------------------
def _reference_f32(x, p):
    h1 = jax.nn.relu(x @ p["w1"] + p["b1"])
    feat = jax.nn.relu(h1 @ p["w2"] + p["b2"])
    h3 = jax.nn.relu(feat @ p["w3"] + p["b3"])
    pred = jax.nn.sigmoid(h3 @ p["w4"] + p["b4"])
    return pred, feat


def _reference_bf16_quantized(x, p):
    """Mirrors the kernel's bf16-operand / f32-accumulate numerics."""
    q = lambda a: a.astype(jnp.bfloat16).astype(jnp.float32)
    h1 = jax.nn.relu(q(x) @ q(p["w1"]) + p["b1"])
    feat = jax.nn.relu(q(h1) @ q(p["w2"]) + p["b2"])
    h3 = jax.nn.relu(q(feat) @ q(p["w3"]) + p["b3"])
    z = jnp.sum(h3 * p["w4"].T, axis=-1, keepdims=True) + p["b4"]
    return jax.nn.sigmoid(z), feat


# ---------------------------------------------------------------------------
# Demo / self-test
# ---------------------------------------------------------------------------
if __name__ == "__main__":
    key = jax.random.PRNGKey(0)
    kx, kp = jax.random.split(key)

    sample_feats, col_feats, join_feats, hid_units = 10, 10, 10, 256
    in_feats = sample_feats + col_feats * 2 + join_feats  # 40
    batch = 13  # not a multiple of 8/tm -> exercises the ragged-final-block masking

    x = jax.random.normal(kx, (batch, in_feats), jnp.float32)
    params = make_params(kp, sample_feats, col_feats, join_feats, hid_units)
    kparams = prepare_kernel_params(params)

    pred, feature = linear_model_forward(x, kparams)
    pred = jax.block_until_ready(pred)
    feature = jax.block_until_ready(feature)
    assert pred.shape == (batch, 1) and feature.shape == (batch, hid_units)
    assert pred.dtype == jnp.float32 and feature.dtype == jnp.bfloat16

    # Strict check vs. a reference that mimics the kernel's bf16-operand numerics.
    # (feature itself is stored in bf16 -> ~3 decimal digits.)
    pred_q, feat_q = _reference_bf16_quantized(x, params)
    assert jnp.allclose(pred, pred_q, atol=1e-3, rtol=1e-3)
    assert jnp.allclose(feature.astype(jnp.float32), feat_q, atol=1e-2, rtol=1e-2)

    # Loose check vs. the pure-f32 reference (bf16 operand/output quantization only).
    pred_f, feat_f = _reference_f32(x, params)
    assert jnp.allclose(pred, pred_f, atol=5e-2, rtol=5e-2)
    assert jnp.allclose(feature.astype(jnp.float32), feat_f, atol=5e-2, rtol=5e-2)

    # TODO(synk): feature is returned in bf16 (HBM-traffic optimization); pass
    # feature_dtype=jnp.float32 to linear_model_forward for strict f32 parity
    # with the PyTorch module's output dtype.
    print("KERNEL_OK")
</pallas_src>

<mosaic_0001>
module attributes {stable_mosaic.version = 11 : i64} {
  func.func @_mlp_kernel(%arg0: i32, %arg1: memref<16x40xf32, #tpu.memory_space<vmem>>, %arg2: memref<40x256xbf16, #tpu.memory_space<vmem>>, %arg3: memref<1x256xf32, #tpu.memory_space<vmem>>, %arg4: memref<256x256xbf16, #tpu.memory_space<vmem>>, %arg5: memref<1x256xf32, #tpu.memory_space<vmem>>, %arg6: memref<256x256xbf16, #tpu.memory_space<vmem>>, %arg7: memref<1x256xf32, #tpu.memory_space<vmem>>, %arg8: memref<1x256xf32, #tpu.memory_space<vmem>>, %arg9: memref<1x1xf32, #tpu.memory_space<vmem>>, %arg10: memref<16x1xf32, #tpu.memory_space<vmem>>, %arg11: memref<16x256xbf16, #tpu.memory_space<vmem>>) attributes {dimension_semantics = [#tpu.dimension_semantics<parallel>], iteration_bounds = array<i64: 1>, scalar_prefetch = 0 : i64, scratch_operands = 0 : i64, tpu.core_type = #tpu.core_type<tc>, window_params = [{transform_indices = @transform_0, window_bounds = array<i64: 16, 40>}, {pipeline_mode = #tpu.pipeline_mode<synchronous>, transform_indices = @transform_1, window_bounds = array<i64: 40, 256>}, {pipeline_mode = #tpu.pipeline_mode<synchronous>, transform_indices = @transform_2, window_bounds = array<i64: 1, 256>}, {pipeline_mode = #tpu.pipeline_mode<synchronous>, transform_indices = @transform_3, window_bounds = array<i64: 256, 256>}, {pipeline_mode = #tpu.pipeline_mode<synchronous>, transform_indices = @transform_4, window_bounds = array<i64: 1, 256>}, {pipeline_mode = #tpu.pipeline_mode<synchronous>, transform_indices = @transform_5, window_bounds = array<i64: 256, 256>}, {pipeline_mode = #tpu.pipeline_mode<synchronous>, transform_indices = @transform_6, window_bounds = array<i64: 1, 256>}, {pipeline_mode = #tpu.pipeline_mode<synchronous>, transform_indices = @transform_7, window_bounds = array<i64: 1, 256>}, {pipeline_mode = #tpu.pipeline_mode<synchronous>, transform_indices = @transform_8, window_bounds = array<i64: 1, 1>}, {transform_indices = @transform_9, window_bounds = array<i64: 16, 1>}, {transform_indices = @transform_10, window_bounds = array<i64: 16, 256>}]} {
    %c0 = arith.constant 0 : index
    %c0_0 = arith.constant 0 : index
    %0 = vector.load %arg1[%c0, %c0_0] : memref<16x40xf32, #tpu.memory_space<vmem>>, vector<16x40xf32>
    %1 = arith.truncf %0 : vector<16x40xf32> to vector<16x40xbf16>
    %c0_1 = arith.constant 0 : index
    %c0_2 = arith.constant 0 : index
    %2 = vector.load %arg2[%c0_1, %c0_2] : memref<40x256xbf16, #tpu.memory_space<vmem>>, vector<40x256xbf16>
    %cst = arith.constant dense<0.000000e+00> : vector<16x256xf32>
    %3 = tpu.matmul %1, %2, %cst {dimension_numbers = #tpu.dot_dimension_numbers<[1], [0], [0], [1], [0, 0, 1, 1], [], []>} : vector<16x40xbf16>, vector<40x256xbf16>, vector<16x256xf32> -> vector<16x256xf32>
    %c0_3 = arith.constant 0 : index
    %c0_4 = arith.constant 0 : index
    %4 = vector.load %arg3[%c0_3, %c0_4] : memref<1x256xf32, #tpu.memory_space<vmem>>, vector<1x256xf32>
    %5 = vector.broadcast %4 : vector<1x256xf32> to vector<16x256xf32>
    %6 = arith.addf %3, %5 : vector<16x256xf32>
    %cst_5 = arith.constant 0.000000e+00 : f32
    %7 = vector.broadcast %cst_5 : f32 to vector<16x256xf32>
    %8 = arith.maximumf %6, %7 : vector<16x256xf32>
    %9 = arith.truncf %8 : vector<16x256xf32> to vector<16x256xbf16>
    %c0_6 = arith.constant 0 : index
    %c0_7 = arith.constant 0 : index
    %10 = vector.load %arg4[%c0_6, %c0_7] : memref<256x256xbf16, #tpu.memory_space<vmem>>, vector<256x256xbf16>
    %cst_8 = arith.constant dense<0.000000e+00> : vector<16x256xf32>
    %11 = tpu.matmul %9, %10, %cst_8 {dimension_numbers = #tpu.dot_dimension_numbers<[1], [0], [0], [1], [0, 0, 1, 1], [], []>} : vector<16x256xbf16>, vector<256x256xbf16>, vector<16x256xf32> -> vector<16x256xf32>
    %c0_9 = arith.constant 0 : index
    %c0_10 = arith.constant 0 : index
    %12 = vector.load %arg5[%c0_9, %c0_10] : memref<1x256xf32, #tpu.memory_space<vmem>>, vector<1x256xf32>
    %13 = vector.broadcast %12 : vector<1x256xf32> to vector<16x256xf32>
    %14 = arith.addf %11, %13 : vector<16x256xf32>
    %cst_11 = arith.constant 0.000000e+00 : f32
    %15 = vector.broadcast %cst_11 : f32 to vector<16x256xf32>
    %16 = arith.maximumf %14, %15 : vector<16x256xf32>
    %17 = arith.truncf %16 : vector<16x256xf32> to vector<16x256xbf16>
    %c0_12 = arith.constant 0 : index
    %c0_13 = arith.constant 0 : index
    %18 = vector.load %arg6[%c0_12, %c0_13] : memref<256x256xbf16, #tpu.memory_space<vmem>>, vector<256x256xbf16>
    %cst_14 = arith.constant dense<0.000000e+00> : vector<16x256xf32>
    %19 = tpu.matmul %17, %18, %cst_14 {dimension_numbers = #tpu.dot_dimension_numbers<[1], [0], [0], [1], [0, 0, 1, 1], [], []>} : vector<16x256xbf16>, vector<256x256xbf16>, vector<16x256xf32> -> vector<16x256xf32>
    %c0_15 = arith.constant 0 : index
    %c0_16 = arith.constant 0 : index
    %20 = vector.load %arg7[%c0_15, %c0_16] : memref<1x256xf32, #tpu.memory_space<vmem>>, vector<1x256xf32>
    %21 = vector.broadcast %20 : vector<1x256xf32> to vector<16x256xf32>
    %22 = arith.addf %19, %21 : vector<16x256xf32>
    %cst_17 = arith.constant 0.000000e+00 : f32
    %23 = vector.broadcast %cst_17 : f32 to vector<16x256xf32>
    %24 = arith.maximumf %22, %23 : vector<16x256xf32>
    %c0_18 = arith.constant 0 : index
    %c0_19 = arith.constant 0 : index
    %25 = vector.load %arg8[%c0_18, %c0_19] : memref<1x256xf32, #tpu.memory_space<vmem>>, vector<1x256xf32>
    %26 = vector.broadcast %25 : vector<1x256xf32> to vector<16x256xf32>
    %27 = arith.mulf %24, %26 : vector<16x256xf32>
    %cst_20 = arith.constant dense<0.000000e+00> : vector<16xf32>
    %28 = vector.multi_reduction <add>, %27, %cst_20 [1] : vector<16x256xf32> to vector<16xf32>
    %29 = vector.shape_cast %28 : vector<16xf32> to vector<16x1xf32>
    %c0_21 = arith.constant 0 : index
    %c0_22 = arith.constant 0 : index
    %30 = vector.load %arg9[%c0_21, %c0_22] : memref<1x1xf32, #tpu.memory_space<vmem>>, vector<1x1xf32>
    %31 = vector.broadcast %30 : vector<1x1xf32> to vector<16x1xf32>
    %32 = arith.addf %29, %31 : vector<16x1xf32>
    %33 = arith.negf %32 : vector<16x1xf32>
    %34 = math.exp %33 : vector<16x1xf32>
    %cst_23 = arith.constant 1.000000e+00 : f32
    %35 = vector.broadcast %cst_23 : f32 to vector<16x1xf32>
    %36 = arith.addf %35, %34 : vector<16x1xf32>
    %37 = arith.divf %35, %36 : vector<16x1xf32>
    %c0_24 = arith.constant 0 : index
    %c0_25 = arith.constant 0 : index
    %38 = vector.load %arg10[%c0_24, %c0_25] : memref<16x1xf32, #tpu.memory_space<vmem>>, vector<16x1xf32>
    tpu.vector_store %arg10[%c0_24, %c0_25], %37 {strides = array<i32>} : memref<16x1xf32, #tpu.memory_space<vmem>>, vector<16x1xf32>,
    %39 = arith.truncf %16 : vector<16x256xf32> to vector<16x256xbf16>
    %c0_26 = arith.constant 0 : index
    %c0_27 = arith.constant 0 : index
    %40 = vector.load %arg11[%c0_26, %c0_27] : memref<16x256xbf16, #tpu.memory_space<vmem>>, vector<16x256xbf16>
    tpu.vector_store %arg11[%c0_26, %c0_27], %39 {strides = array<i32>} : memref<16x256xbf16, #tpu.memory_space<vmem>>, vector<16x256xbf16>,
    return
  }
  func.func @transform_0(%arg0: i32) -> (i32, i32) {
    %c0_i32 = arith.constant 0 : i32
    %c0_i32_0 = arith.constant 0 : i32
    return %arg0, %c0_i32 : i32, i32
  }
  func.func @transform_1(%arg0: i32) -> (i32, i32) {
    %c0_i32 = arith.constant 0 : i32
    %c0_i32_0 = arith.constant 0 : i32
    %c0_i32_1 = arith.constant 0 : i32
    return %c0_i32, %c0_i32_0 : i32, i32
  }
  func.func @transform_2(%arg0: i32) -> (i32, i32) {
    %c0_i32 = arith.constant 0 : i32
    %c0_i32_0 = arith.constant 0 : i32
    %c0_i32_1 = arith.constant 0 : i32
    return %c0_i32, %c0_i32_0 : i32, i32
  }
  func.func @transform_3(%arg0: i32) -> (i32, i32) {
    %c0_i32 = arith.constant 0 : i32
    %c0_i32_0 = arith.constant 0 : i32
    %c0_i32_1 = arith.constant 0 : i32
    return %c0_i32, %c0_i32_0 : i32, i32
  }
  func.func @transform_4(%arg0: i32) -> (i32, i32) {
    %c0_i32 = arith.constant 0 : i32
    %c0_i32_0 = arith.constant 0 : i32
    %c0_i32_1 = arith.constant 0 : i32
    return %c0_i32, %c0_i32_0 : i32, i32
  }
  func.func @transform_5(%arg0: i32) -> (i32, i32) {
    %c0_i32 = arith.constant 0 : i32
    %c0_i32_0 = arith.constant 0 : i32
    %c0_i32_1 = arith.constant 0 : i32
    return %c0_i32, %c0_i32_0 : i32, i32
  }
  func.func @transform_6(%arg0: i32) -> (i32, i32) {
    %c0_i32 = arith.constant 0 : i32
    %c0_i32_0 = arith.constant 0 : i32
    %c0_i32_1 = arith.constant 0 : i32
    return %c0_i32, %c0_i32_0 : i32, i32
  }
  func.func @transform_7(%arg0: i32) -> (i32, i32) {
    %c0_i32 = arith.constant 0 : i32
    %c0_i32_0 = arith.constant 0 : i32
    %c0_i32_1 = arith.constant 0 : i32
    return %c0_i32, %c0_i32_0 : i32, i32
  }
  func.func @transform_8(%arg0: i32) -> (i32, i32) {
    %c0_i32 = arith.constant 0 : i32
    %c0_i32_0 = arith.constant 0 : i32
    %c0_i32_1 = arith.constant 0 : i32
    return %c0_i32, %c0_i32_0 : i32, i32
  }
  func.func @transform_9(%arg0: i32) -> (i32, i32) {
    %c0_i32 = arith.constant 0 : i32
    %c0_i32_0 = arith.constant 0 : i32
    return %arg0, %c0_i32 : i32, i32
  }
  func.func @transform_10(%arg0: i32) -> (i32, i32) {
    %c0_i32 = arith.constant 0 : i32
    %c0_i32_0 = arith.constant 0 : i32
    return %arg0, %c0_i32 : i32, i32
  }
}

</mosaic_0001>

<llo_original>
// kernel: tpu_custom_call.1
$region0: #{tpu_custom_call.1}
  #allocation0 [shape = 'u32[]', space=smem, size = 0x4, offset = 0x4, fixed_abs, tag = 'smem constant byte address 0x4 - core index']
  #allocation1 [shape = 'u32[72,128]{1,0:T(1,128)}', space=vmem, size = 0x9000, scoped, tag = 'internal scratch']
  #allocation2 [shape = 'f32[1,1]{1,0:T(1,128)S(1)}', space=vmem, size = 0x200, scoped, tag = 'scoped memory for tpu_custom_call.1']
  %s0 = inlined_call_operand.hbm [shape: f32[13,40], index: 0, kind: input, shape index: {}]
  %s1 = inlined_call_operand.hbm [shape: bf16[40,256], index: 1, kind: input, shape index: {}]
  %s2 = inlined_call_operand.vmem [shape: f32[1,256], index: 2, kind: input, shape index: {}]
  %s3 = inlined_call_operand.hbm [shape: bf16[256,256], index: 3, kind: input, shape index: {}]
  %s4 = inlined_call_operand.vmem [shape: f32[1,256], index: 4, kind: input, shape index: {}]
  %s5 = inlined_call_operand.hbm [shape: bf16[256,256], index: 5, kind: input, shape index: {}]
  %s6 = inlined_call_operand.vmem [shape: f32[1,256], index: 6, kind: input, shape index: {}]
  %s7 = inlined_call_operand.vmem [shape: f32[1,256], index: 7, kind: input, shape index: {}]
  %s8 = inlined_call_operand.<no memory space> [shape: f32[1,1], index: 8, kind: input, shape index: {}]
  %s9 = inlined_call_operand.vmem [shape: f32[13,1], index: 9, kind: output, shape index: {0}]
  %s10 = inlined_call_operand.hbm [shape: bf16[13,256], index: 10, kind: output, shape index: {1}]
  %11 = xla_tuple %s9, %s10
  %s12 = sld [smem:[#allocation0]]
  $region70: #{tpu_custom_call.1} parent=0
    _
  %s14 = ssub.s32 1, %s12
  %s15 = scalar_select 0, %s14, %s12
  %v16 = vstv %s8
  %17 = vst [vmem:[#allocation2] sm:$0x1] %v16
  $region1: #{tpu_custom_call.1} parent=0
    #allocation3 [shape = 'u8[8192]{0}', space=vmem, size = 0x2000, scoped, tag = 'input window, operand 0, single buffered']
    #allocation4 [shape = 's32[1]{0}', space=sflag, size = 0x4, scoped, tag = 'scoped memory for tpu_custom_call.1']
    #allocation5 [shape = 's32[1]{0}', space=sflag, size = 0x4, scoped, tag = 'scoped memory for tpu_custom_call.1']
    #allocation6 [shape = 'u8[20480]{0}', space=vmem, size = 0x5000, scoped, tag = 'input window, operand 1, single buffered']
    #allocation7 [shape = 's32[1]{0}', space=sflag, size = 0x4, scoped, tag = 'scoped memory for tpu_custom_call.1']
    #allocation8 [shape = 'u8[131072]{0}', space=vmem, size = 0x20000, scoped, tag = 'input window, operand 3, single buffered']
    #allocation9 [shape = 'u8[131072]{0}', space=vmem, size = 0x20000, scoped, tag = 'input window, operand 5, single buffered']
    #allocation10 [shape = 's32[1]{0}', space=sflag, size = 0x4, scoped, tag = 'scoped memory for tpu_custom_call.1']
    #allocation11 [shape = 'u8[8192]{0}', space=vmem, size = 0x2000, scoped, tag = 'output window, operand 1, single buffered']
    %18 = vsyncpa [#allocation4], 0
    %19 = vsyncpa [#allocation7], 0
    %20 = vsyncpa [#allocation10], 0
    %21 = vsyncpa [#allocation5], 0
    // Predicated region
    $region2: #{tpu_custom_call.1} parent=1 // pred_check
      _
    $region3: #{tpu_custom_call.1} parent=1 // pred_check_branch
      %23 = sbr.rel (0) target = $region5
    $region4: #{tpu_custom_call.1} parent=1 // pred_region
      %25 = vsyncadd [#allocation4], 0
      %s26 = sshll.u32 %s0, 4
      %s27 = int_to_ptr.hbm [resolvable:$true] %s26
      %s28 = sshll.u32 [#allocation3], 4
      %s29 = int_to_ptr.vmem [resolvable:$true] %s28
      %34 = dma.hbm_to_vmem [thread:$0]  %s27, 256, %s29, [#allocation4], 128, 128, 8
    $region5: #{tpu_custom_call.1} parent=1 // pred_fallthru
      _
    // Predicated region
    $region6: #{tpu_custom_call.1} parent=1 // pred_check
      _
    $region7: #{tpu_custom_call.1} parent=1 // pred_check_branch
      %36 = sbr.rel (0) target = $region9
    $region8: #{tpu_custom_call.1} parent=1 // pred_region
      %38 = vsyncadd [#allocation7], 0
      %s39 = sshll.u32 %s1, 4
      %s40 = int_to_ptr.hbm [resolvable:$true] %s39
      %s41 = sshll.u32 [#allocation6], 4
      %s42 = int_to_ptr.vmem [resolvable:$true] %s41
      %47 = dma.hbm_to_vmem [thread:$0]  %s40, 640, %s42, [#allocation7], 128, 128, 8
    $region9: #{tpu_custom_call.1} parent=1 // pred_fallthru
      _
    // Predicated region
    $region10: #{tpu_custom_call.1} parent=1 // pred_check
      _
    $region11: #{tpu_custom_call.1} parent=1 // pred_check_branch
      %49 = sbr.rel (0) target = $region13
    $region12: #{tpu_custom_call.1} parent=1 // pred_region
      _
    $region13: #{tpu_custom_call.1} parent=1 // pred_fallthru
      _
    // Predicated region
    $region14: #{tpu_custom_call.1} parent=1 // pred_check
      _
    $region15: #{tpu_custom_call.1} parent=1 // pred_check_branch
      %51 = sbr.rel (0) target = $region17
    $region16: #{tpu_custom_call.1} parent=1 // pred_region
      %53 = vsyncadd [#allocation7], 0
      %s54 = sshll.u32 %s3, 4
      %s55 = int_to_ptr.hbm [resolvable:$true] %s54
      %s56 = sshll.u32 [#allocation8], 4
      %s57 = int_to_ptr.vmem [resolvable:$true] %s56
      %62 = dma.hbm_to_vmem [thread:$0]  %s55, 4096, %s57, [#allocation7], 128, 128, 8
    $region17: #{tpu_custom_call.1} parent=1 // pred_fallthru
      _
    // Predicated region
    $region18: #{tpu_custom_call.1} parent=1 // pred_check
      _
    $region19: #{tpu_custom_call.1} parent=1 // pred_check_branch
      %64 = sbr.rel (0) target = $region21
    $region20: #{tpu_custom_call.1} parent=1 // pred_region
      _
    $region21: #{tpu_custom_call.1} parent=1 // pred_fallthru
      _
    // Predicated region
    $region22: #{tpu_custom_call.1} parent=1 // pred_check
      _
    $region23: #{tpu_custom_call.1} parent=1 // pred_check_branch
      %66 = sbr.rel (0) target = $region25
    $region24: #{tpu_custom_call.1} parent=1 // pred_region
      %68 = vsyncadd [#allocation10], 0
      %s69 = sshll.u32 %s5, 4
      %s70 = int_to_ptr.hbm [resolvable:$true] %s69
      %s71 = sshll.u32 [#allocation9], 4
      %s72 = int_to_ptr.vmem [resolvable:$true] %s71
      %77 = dma.hbm_to_vmem [thread:$0]  %s70, 4096, %s72, [#allocation10], 128, 128, 8
    $region25: #{tpu_custom_call.1} parent=1 // pred_fallthru
      _
    // Predicated region
    $region26: #{tpu_custom_call.1} parent=1 // pred_check
      _
    $region27: #{tpu_custom_call.1} parent=1 // pred_check_branch
      %79 = sbr.rel (0) target = $region29
    $region28: #{tpu_custom_call.1} parent=1 // pred_region
      _
    $region29: #{tpu_custom_call.1} parent=1 // pred_fallthru
      _
    // Predicated region
    $region30: #{tpu_custom_call.1} parent=1 // pred_check
      _
    $region31: #{tpu_custom_call.1} parent=1 // pred_check_branch
      %81 = sbr.rel (0) target = $region33
    $region32: #{tpu_custom_call.1} parent=1 // pred_region
      _
    $region33: #{tpu_custom_call.1} parent=1 // pred_fallthru
      _
    // Predicated region
    $region34: #{tpu_custom_call.1} parent=1 // pred_check
      _
    $region35: #{tpu_custom_call.1} parent=1 // pred_check_branch
      %83 = sbr.rel (0) target = $region37
    $region36: #{tpu_custom_call.1} parent=1 // pred_region
      _
    $region37: #{tpu_custom_call.1} parent=1 // pred_fallthru
      _
    // Predicated region
    $region38: #{tpu_custom_call.1} parent=1 // pred_check
      _
    $region39: #{tpu_custom_call.1} parent=1 // pred_check_branch
      %85 = sbr.rel (0) target = $region41
    $region40: #{tpu_custom_call.1} parent=1 // pred_region
      %87 = dma.done [#allocation4], 256
    $region41: #{tpu_custom_call.1} parent=1 // pred_fallthru
      _
    // Predicated region
    $region42: #{tpu_custom_call.1} parent=1 // pred_check
      _
    $region43: #{tpu_custom_call.1} parent=1 // pred_check_branch
      %89 = sbr.rel (0) target = $region45
    $region44: #{tpu_custom_call.1} parent=1 // pred_region
      %91 = dma.done [#allocation7], 640
    $region45: #{tpu_custom_call.1} parent=1 // pred_fallthru
      _
    // Predicated region
    $region46: #{tpu_custom_call.1} parent=1 // pred_check
      _
    $region47: #{tpu_custom_call.1} parent=1 // pred_check_branch
      %93 = sbr.rel (0) target = $region49
    $region48: #{tpu_custom_call.1} parent=1 // pred_region
      %95 = dma.done [#allocation7], 4096
    $region49: #{tpu_custom_call.1} parent=1 // pred_fallthru
      _
    // Predicated region
    $region50: #{tpu_custom_call.1} parent=1 // pred_check
      _
    $region51: #{tpu_custom_call.1} parent=1 // pred_check_branch
      %97 = sbr.rel (0) target = $region53
    $region52: #{tpu_custom_call.1} parent=1 // pred_region
      %99 = dma.done [#allocation10], 4096
    $region53: #{tpu_custom_call.1} parent=1 // pred_fallthru
      _
    %v101 = vld [vmem:[#allocation3] sm:$0xff]
    %v102 = vld [vmem:[#allocation3 + $0x8] sm:$0xff]
    %v103 = vpack.c.bf16 %v102, %v101
    %v104 = vld [vmem:[#allocation6] sm:$0xff]
    %v105 = vld [vmem:[#allocation6 + $0x8] sm:$0xff]
    %v106 = vld [vmem:[#allocation6 + $0x10] sm:$0xff]
    %v107 = vld [vmem:[#allocation6 + $0x18] sm:$0xff]
    %v108 = vld [vmem:[#allocation6 + $0x20] sm:$0xff]
    %v109 = vld [vmem:[%s2] sm:$0x3]
    %v111 = vperm.slane %v109, 0
    %v112 = vperm.slane %v109, 1
    %v120 = vunpack.c.l.b16 %v104
    %v121 = vunpack.c.h.b16 %v104
    %v122 = vunpack.c.l.b16 %v105
    %v123 = vunpack.c.h.b16 %v105
    %v124 = vunpack.c.l.b16 %v106
    %v125 = vunpack.c.h.b16 %v106
    %v126 = vunpack.c.l.b16 %v107
    %v127 = vunpack.c.h.b16 %v107
    %v128 = vunpack.c.l.b16 %v108
    %v129 = vunpack.c.h.b16 %v108
    %v130 = vpack.c.b16 %v122, %v120
    %v131 = vpack.c.b16 %v123, %v121
    %v132 = vpack.c.b16 %v126, %v124
    %v133 = vpack.c.b16 %v127, %v125
    %v134 = vpack.c.b16 %v128, %v128
    %v135 = vpack.c.b16 %v129, %v129
    %vm140 = vcmask 326656
    %v142 = vsel %vm140, %v103, 0
    %vm144 = vcmask 1043456
    %v146 = vsel %vm144, %v134, 0
    %v149 = vsel %vm144, %v135, 0
    %151 = vmatpush.bf16.msra.mxu0 0
    %152 = vmatpush.bf16.msra.mxu0 0
    %153 = vmatpush.bf16.msra.mxu0 0
    %154 = vmatpush.bf16.msra.mxu0 0
    %155 = vmatpush.bf16.msra.mxu0 0
    %156 = vmatpush.bf16.msra.mxu0 %v146
    %157 = vmatpush.bf16.msra.mxu0 %v132
    %158 = vmatpush.bf16.msra.mxu0 %v130
    %159 = vmatmul.bf16.gmra.mxu0 %v142
    %v160 = vpop.f32.mrf.mxu0
    %v161 = vadd.f32 %v111, %v160
    %v162 = vpop.f32.mrf.mxu0
    %v163 = vadd.f32 %v111, %v162
    %164 = vdwg.mxu0
    %165 = vmatpush.bf16.msra.mxu0 0
    %166 = vmatpush.bf16.msra.mxu0 0
    %167 = vmatpush.bf16.msra.mxu0 0
    %168 = vmatpush.bf16.msra.mxu0 0
    %169 = vmatpush.bf16.msra.mxu0 0
    %170 = vmatpush.bf16.msra.mxu0 %v149
    %171 = vmatpush.bf16.msra.mxu0 %v133
    %172 = vmatpush.bf16.msra.mxu0 %v131
    %173 = vmatmul.bf16.gmra.mxu0 %v142
    %v174 = vpop.f32.mrf.mxu0
    %v175 = vadd.f32 %v112, %v174
    %v176 = vpop.f32.mrf.mxu0
    %v177 = vadd.f32 %v112, %v176
    %178 = vdwg.mxu0
    %v179 = vmax.f32 %v161, 0.0
    %v180 = vmax.f32 %v175, 0.0
    %v181 = vmax.f32 %v163, 0.0
    %v182 = vmax.f32 %v177, 0.0
    %v183 = vpack.c.bf16 %v181, %v179
    %v184 = vpack.c.bf16 %v182, %v180
    %v185 = vld [vmem:[#allocation8] sm:$0xff]
    %v186 = vld [vmem:[#allocation8 + $0x8] sm:$0xff]
    %v187 = vld [vmem:[#allocation8 + $0x10] sm:$0xff]
    %v188 = vld [vmem:[#allocation8 + $0x18] sm:$0xff]
    %v189 = vld [vmem:[#allocation8 + $0x20] sm:$0xff]
    %v190 = vld [vmem:[#allocation8 + $0x28] sm:$0xff]
    %v191 = vld [vmem:[#allocation8 + $0x30] sm:$0xff]
    %v192 = vld [vmem:[#allocation8 + $0x38] sm:$0xff]
    %v193 = vld [vmem:[#allocation8 + $0x40] sm:$0xff]
    %v194 = vld [vmem:[#allocation8 + $0x48] sm:$0xff]
    %v195 = vld [vmem:[#allocation8 + $0x50] sm:$0xff]
    %v196 = vld [vmem:[#allocation8 + $0x58] sm:$0xff]
    %v197 = vld [vmem:[#allocation8 + $0x60] sm:$0xff]
    %v198 = vld [vmem:[#allocation8 + $0x68] sm:$0xff]
    %v199 = vld [vmem:[#allocation8 + $0x70] sm:$0xff]
    %v200 = vld [vmem:[#allocation8 + $0x78] sm:$0xff]
    %v201 = vld [vmem:[#allocation8 + $0x80] sm:$0xff]
    %v202 = vld [vmem:[#allocation8 + $0x88] sm:$0xff]
    %v203 = vld [vmem:[#allocation8 + $0x90] sm:$0xff]
    %v204 = vld [vmem:[#allocation8 + $0x98] sm:$0xff]
    %v205 = vld [vmem:[#allocation8 + $0xa0] sm:$0xff]
    %v206 = vld [vmem:[#allocation8 + $0xa8] sm:$0xff]
    %v207 = vld [vmem:[#allocation8 + $0xb0] sm:$0xff]
    %v208 = vld [vmem:[#allocation8 + $0xb8] sm:$0xff]
    %v209 = vld [vmem:[#allocation8 + $0xc0] sm:$0xff]
    %v210 = vld [vmem:[#allocation8 + $0xc8] sm:$0xff]
    %v211 = vld [vmem:[#allocation8 + $0xd0] sm:$0xff]
    %v212 = vld [vmem:[#allocation8 + $0xd8] sm:$0xff]
    %v213 = vld [vmem:[#allocation8 + $0xe0] sm:$0xff]
    %v214 = vld [vmem:[#allocation8 + $0xe8] sm:$0xff]
    %v215 = vld [vmem:[#allocation8 + $0xf0] sm:$0xff]
    %v216 = vld [vmem:[#allocation8 + $0xf8] sm:$0xff]
    %v217 = vld [vmem:[%s4] sm:$0x3]
    %v219 = vperm.slane %v217, 0
    %v220 = vperm.slane %v217, 1
    %v255 = vunpack.c.l.b16 %v185
    %v256 = vunpack.c.h.b16 %v185
    %v257 = vunpack.c.l.b16 %v186
    %v258 = vunpack.c.h.b16 %v186
    %v259 = vunpack.c.l.b16 %v187
    %v260 = vunpack.c.h.b16 %v187
    %v261 = vunpack.c.l.b16 %v188
    %v262 = vunpack.c.h.b16 %v188
    %v263 = vunpack.c.l.b16 %v189
    %v264 = vunpack.c.h.b16 %v189
    %v265 = vunpack.c.l.b16 %v190
    %v266 = vunpack.c.h.b16 %v190
    %v267 = vunpack.c.l.b16 %v191
    %v268 = vunpack.c.h.b16 %v191
    %v269 = vunpack.c.l.b16 %v192
    %v270 = vunpack.c.h.b16 %v192
    %v271 = vunpack.c.l.b16 %v193
    %v272 = vunpack.c.h.b16 %v193
    %v273 = vunpack.c.l.b16 %v194
    %v274 = vunpack.c.h.b16 %v194
    %v275 = vunpack.c.l.b16 %v195
    %v276 = vunpack.c.h.b16 %v195
    %v277 = vunpack.c.l.b16 %v196
    %v278 = vunpack.c.h.b16 %v196
    %v279 = vunpack.c.l.b16 %v197
    %v280 = vunpack.c.h.b16 %v197
    %v281 = vunpack.c.l.b16 %v198
    %v282 = vunpack.c.h.b16 %v198
    %v283 = vunpack.c.l.b16 %v199
    %v284 = vunpack.c.h.b16 %v199
    %v285 = vunpack.c.l.b16 %v200
    %v286 = vunpack.c.h.b16 %v200
    %v287 = vunpack.c.l.b16 %v201
    %v288 = vunpack.c.h.b16 %v201
    %v289 = vunpack.c.l.b16 %v202
    %v290 = vunpack.c.h.b16 %v202
    %v291 = vunpack.c.l.b16 %v203
    %v292 = vunpack.c.h.b16 %v203
    %v293 = vunpack.c.l.b16 %v204
    %v294 = vunpack.c.h.b16 %v204
    %v295 = vunpack.c.l.b16 %v205
    %v296 = vunpack.c.h.b16 %v205
    %v297 = vunpack.c.l.b16 %v206
    %v298 = vunpack.c.h.b16 %v206
    %v299 = vunpack.c.l.b16 %v207
    %v300 = vunpack.c.h.b16 %v207
    %v301 = vunpack.c.l.b16 %v208
    %v302 = vunpack.c.h.b16 %v208
    %v303 = vunpack.c.l.b16 %v209
    %v304 = vunpack.c.h.b16 %v209
    %v305 = vunpack.c.l.b16 %v210
    %v306 = vunpack.c.h.b16 %v210
    %v307 = vunpack.c.l.b16 %v211
    %v308 = vunpack.c.h.b16 %v211
    %v309 = vunpack.c.l.b16 %v212
    %v310 = vunpack.c.h.b16 %v212
    %v311 = vunpack.c.l.b16 %v213
    %v312 = vunpack.c.h.b16 %v213
    %v313 = vunpack.c.l.b16 %v214
    %v314 = vunpack.c.h.b16 %v214
    %v315 = vunpack.c.l.b16 %v215
    %v316 = vunpack.c.h.b16 %v215
    %v317 = vunpack.c.l.b16 %v216
    %v318 = vunpack.c.h.b16 %v216
    %v319 = vpack.c.b16 %v257, %v255
    %v320 = vpack.c.b16 %v258, %v256
    %v321 = vpack.c.b16 %v261, %v259
    %v322 = vpack.c.b16 %v262, %v260
    %v323 = vpack.c.b16 %v265, %v263
    %v324 = vpack.c.b16 %v266, %v264
    %v325 = vpack.c.b16 %v269, %v267
    %v326 = vpack.c.b16 %v270, %v268
    %v327 = vpack.c.b16 %v273, %v271
    %v328 = vpack.c.b16 %v274, %v272
    %v329 = vpack.c.b16 %v277, %v275
    %v330 = vpack.c.b16 %v278, %v276
    %v331 = vpack.c.b16 %v281, %v279
    %v332 = vpack.c.b16 %v282, %v280
    %v333 = vpack.c.b16 %v285, %v283
    %v334 = vpack.c.b16 %v286, %v284
    %v335 = vpack.c.b16 %v289, %v287
    %v336 = vpack.c.b16 %v290, %v288
    %v337 = vpack.c.b16 %v293, %v291
    %v338 = vpack.c.b16 %v294, %v292
    %v339 = vpack.c.b16 %v297, %v295
    %v340 = vpack.c.b16 %v298, %v296
    %v341 = vpack.c.b16 %v301, %v299
    %v342 = vpack.c.b16 %v302, %v300
    %v343 = vpack.c.b16 %v305, %v303
    %v344 = vpack.c.b16 %v306, %v304
    %v345 = vpack.c.b16 %v309, %v307
    %v346 = vpack.c.b16 %v310, %v308
    %v347 = vpack.c.b16 %v313, %v311
    %v348 = vpack.c.b16 %v314, %v312
    %v349 = vpack.c.b16 %v317, %v315
    %v350 = vpack.c.b16 %v318, %v316
    %383 = vmatpush.bf16.msra.mxu0 %v333
    %384 = vmatpush.bf16.msra.mxu0 %v331
    %385 = vmatpush.bf16.msra.mxu0 %v329
    %386 = vmatpush.bf16.msra.mxu0 %v327
    %387 = vmatpush.bf16.msra.mxu0 %v325
    %388 = vmatpush.bf16.msra.mxu0 %v323
    %389 = vmatpush.bf16.msra.mxu0 %v321
    %390 = vmatpush.bf16.msra.mxu0 %v319
    %391 = vmatmul.bf16.gmra.mxu0 %v183
    %v392 = vpop.f32.mrf.mxu0
    %v393 = vadd.f32 %v219, %v392
    %v394 = vpop.f32.mrf.mxu0
    %v395 = vadd.f32 %v219, %v394
    %396 = vdwg.mxu0
    %397 = vmatpush.bf16.msra.mxu0 %v349
    %398 = vmatpush.bf16.msra.mxu0 %v347
    %399 = vmatpush.bf16.msra.mxu0 %v345
    %400 = vmatpush.bf16.msra.mxu0 %v343
    %401 = vmatpush.bf16.msra.mxu0 %v341
    %402 = vmatpush.bf16.msra.mxu0 %v339
    %403 = vmatpush.bf16.msra.mxu0 %v337
    %404 = vmatpush.bf16.msra.mxu0 %v335
    %405 = vmatmul.bf16.gmra.mxu0 %v184
    %v406 = vpop.f32.mrf.mxu0
    %v407 = vadd.f32 %v393, %v406
    %v408 = vpop.f32.mrf.mxu0
    %v409 = vadd.f32 %v395, %v408
    %410 = vdwg.mxu0
    %411 = vmatpush.bf16.msra.mxu0 %v334
    %412 = vmatpush.bf16.msra.mxu0 %v332
    %413 = vmatpush.bf16.msra.mxu0 %v330
    %414 = vmatpush.bf16.msra.mxu0 %v328
    %415 = vmatpush.bf16.msra.mxu0 %v326
    %416 = vmatpush.bf16.msra.mxu0 %v324
    %417 = vmatpush.bf16.msra.mxu0 %v322
    %418 = vmatpush.bf16.msra.mxu0 %v320
    %419 = vmatmul.bf16.gmra.mxu0 %v183
    %v420 = vpop.f32.mrf.mxu0
    %v421 = vadd.f32 %v220, %v420
    %v422 = vpop.f32.mrf.mxu0
    %v423 = vadd.f32 %v220, %v422
    %424 = vdwg.mxu0
    %425 = vmatpush.bf16.msra.mxu0 %v350
    %426 = vmatpush.bf16.msra.mxu0 %v348
    %427 = vmatpush.bf16.msra.mxu0 %v346
    %428 = vmatpush.bf16.msra.mxu0 %v344
    %429 = vmatpush.bf16.msra.mxu0 %v342
    %430 = vmatpush.bf16.msra.mxu0 %v340
    %431 = vmatpush.bf16.msra.mxu0 %v338
    %432 = vmatpush.bf16.msra.mxu0 %v336
    %433 = vmatmul.bf16.gmra.mxu0 %v184
    %v434 = vpop.f32.mrf.mxu0
    %v435 = vadd.f32 %v421, %v434
    %v436 = vpop.f32.mrf.mxu0
    %v437 = vadd.f32 %v423, %v436
    %438 = vdwg.mxu0
    %v439 = vmax.f32 %v407, 0.0
    %v440 = vmax.f32 %v435, 0.0
    %v441 = vmax.f32 %v409, 0.0
    %v442 = vmax.f32 %v437, 0.0
    %v443 = vpack.c.bf16 %v440, %v439
    %v444 = vpack.c.bf16 %v442, %v441
    %v445 = vld [vmem:[#allocation9] sm:$0xff]
    %v446 = vld [vmem:[#allocation9 + $0x8] sm:$0xff]
    %v447 = vld [vmem:[#allocation9 + $0x10] sm:$0xff]
    %v448 = vld [vmem:[#allocation9 + $0x18] sm:$0xff]
    %v449 = vld [vmem:[#allocation9 + $0x20] sm:$0xff]
    %v450 = vld [vmem:[#allocation9 + $0x28] sm:$0xff]
    %v451 = vld [vmem:[#allocation9 + $0x30] sm:$0xff]
    %v452 = vld [vmem:[#allocation9 + $0x38] sm:$0xff]
    %v453 = vld [vmem:[#allocation9 + $0x40] sm:$0xff]
    %v454 = vld [vmem:[#allocation9 + $0x48] sm:$0xff]
    %v455 = vld [vmem:[#allocation9 + $0x50] sm:$0xff]
    %v456 = vld [vmem:[#allocation9 + $0x58] sm:$0xff]
    %v457 = vld [vmem:[#allocation9 + $0x60] sm:$0xff]
    %v458 = vld [vmem:[#allocation9 + $0x68] sm:$0xff]
    %v459 = vld [vmem:[#allocation9 + $0x70] sm:$0xff]
    %v460 = vld [vmem:[#allocation9 + $0x78] sm:$0xff]
    %v461 = vld [vmem:[#allocation9 + $0x80] sm:$0xff]
    %v462 = vld [vmem:[#allocation9 + $0x88] sm:$0xff]
    %v463 = vld [vmem:[#allocation9 + $0x90] sm:$0xff]
    %v464 = vld [vmem:[#allocation9 + $0x98] sm:$0xff]
    %v465 = vld [vmem:[#allocation9 + $0xa0] sm:$0xff]
    %v466 = vld [vmem:[#allocation9 + $0xa8] sm:$0xff]
    %v467 = vld [vmem:[#allocation9 + $0xb0] sm:$0xff]
    %v468 = vld [vmem:[#allocation9 + $0xb8] sm:$0xff]
    %v469 = vld [vmem:[#allocation9 + $0xc0] sm:$0xff]
    %v470 = vld [vmem:[#allocation9 + $0xc8] sm:$0xff]
    %v471 = vld [vmem:[#allocation9 + $0xd0] sm:$0xff]
    %v472 = vld [vmem:[#allocation9 + $0xd8] sm:$0xff]
    %v473 = vld [vmem:[#allocation9 + $0xe0] sm:$0xff]
    %v474 = vld [vmem:[#allocation9 + $0xe8] sm:$0xff]
    %v475 = vld [vmem:[#allocation9 + $0xf0] sm:$0xff]
    %v476 = vld [vmem:[#allocation9 + $0xf8] sm:$0xff]
    %v477 = vld [vmem:[%s6] sm:$0x3]
    %v479 = vperm.slane %v477, 0
    %v480 = vperm.slane %v477, 1
    %v485 = vunpack.c.l.b16 %v443
    %v486 = vunpack.c.h.b16 %v443
    %v487 = vunpack.c.l.b16 %v444
    %v488 = vunpack.c.h.b16 %v444
    %v489 = vpack.c.b16 %v487, %v485
    %v490 = vpack.c.b16 %v488, %v486
    %v525 = vunpack.c.l.b16 %v445
    %v526 = vunpack.c.h.b16 %v445
    %v527 = vunpack.c.l.b16 %v446
    %v528 = vunpack.c.h.b16 %v446
    %v529 = vunpack.c.l.b16 %v447
    %v530 = vunpack.c.h.b16 %v447
    %v531 = vunpack.c.l.b16 %v448
    %v532 = vunpack.c.h.b16 %v448
    %v533 = vunpack.c.l.b16 %v449
    %v534 = vunpack.c.h.b16 %v449
    %v535 = vunpack.c.l.b16 %v450
    %v536 = vunpack.c.h.b16 %v450
    %v537 = vunpack.c.l.b16 %v451
    %v538 = vunpack.c.h.b16 %v451
    %v539 = vunpack.c.l.b16 %v452
    %v540 = vunpack.c.h.b16 %v452
    %v541 = vunpack.c.l.b16 %v453
    %v542 = vunpack.c.h.b16 %v453
    %v543 = vunpack.c.l.b16 %v454
    %v544 = vunpack.c.h.b16 %v454
    %v545 = vunpack.c.l.b16 %v455
    %v546 = vunpack.c.h.b16 %v455
    %v547 = vunpack.c.l.b16 %v456
    %v548 = vunpack.c.h.b16 %v456
    %v549 = vunpack.c.l.b16 %v457
    %v550 = vunpack.c.h.b16 %v457
    %v551 = vunpack.c.l.b16 %v458
    %v552 = vunpack.c.h.b16 %v458
    %v553 = vunpack.c.l.b16 %v459
    %v554 = vunpack.c.h.b16 %v459
    %v555 = vunpack.c.l.b16 %v460
    %v556 = vunpack.c.h.b16 %v460
    %v557 = vunpack.c.l.b16 %v461
    %v558 = vunpack.c.h.b16 %v461
    %v559 = vunpack.c.l.b16 %v462
    %v560 = vunpack.c.h.b16 %v462
    %v561 = vunpack.c.l.b16 %v463
    %v562 = vunpack.c.h.b16 %v463
    %v563 = vunpack.c.l.b16 %v464
    %v564 = vunpack.c.h.b16 %v464
    %v565 = vunpack.c.l.b16 %v465
    %v566 = vunpack.c.h.b16 %v465
    %v567 = vunpack.c.l.b16 %v466
    %v568 = vunpack.c.h.b16 %v466
    %v569 = vunpack.c.l.b16 %v467
    %v570 = vunpack.c.h.b16 %v467
    %v571 = vunpack.c.l.b16 %v468
    %v572 = vunpack.c.h.b16 %v468
    %v573 = vunpack.c.l.b16 %v469
    %v574 = vunpack.c.h.b16 %v469
    %v575 = vunpack.c.l.b16 %v470
    %v576 = vunpack.c.h.b16 %v470
    %v577 = vunpack.c.l.b16 %v471
    %v578 = vunpack.c.h.b16 %v471
    %v579 = vunpack.c.l.b16 %v472
    %v580 = vunpack.c.h.b16 %v472
    %v581 = vunpack.c.l.b16 %v473
    %v582 = vunpack.c.h.b16 %v473
    %v583 = vunpack.c.l.b16 %v474
    %v584 = vunpack.c.h.b16 %v474
    %v585 = vunpack.c.l.b16 %v475
    %v586 = vunpack.c.h.b16 %v475
    %v587 = vunpack.c.l.b16 %v476
    %v588 = vunpack.c.h.b16 %v476
    %v589 = vpack.c.b16 %v527, %v525
    %v590 = vpack.c.b16 %v528, %v526
    %v591 = vpack.c.b16 %v531, %v529
    %v592 = vpack.c.b16 %v532, %v530
    %v593 = vpack.c.b16 %v535, %v533
    %v594 = vpack.c.b16 %v536, %v534
    %v595 = vpack.c.b16 %v539, %v537
    %v596 = vpack.c.b16 %v540, %v538
    %v597 = vpack.c.b16 %v543, %v541
    %v598 = vpack.c.b16 %v544, %v542
    %v599 = vpack.c.b16 %v547, %v545
    %v600 = vpack.c.b16 %v548, %v546
    %v601 = vpack.c.b16 %v551, %v549
    %v602 = vpack.c.b16 %v552, %v550
    %v603 = vpack.c.b16 %v555, %v553
    %v604 = vpack.c.b16 %v556, %v554
    %v605 = vpack.c.b16 %v559, %v557
    %v606 = vpack.c.b16 %v560, %v558
    %v607 = vpack.c.b16 %v563, %v561
    %v608 = vpack.c.b16 %v564, %v562
    %v609 = vpack.c.b16 %v567, %v565
    %v610 = vpack.c.b16 %v568, %v566
    %v611 = vpack.c.b16 %v571, %v569
    %v612 = vpack.c.b16 %v572, %v570
    %v613 = vpack.c.b16 %v575, %v573
    %v614 = vpack.c.b16 %v576, %v574
    %v615 = vpack.c.b16 %v579, %v577
    %v616 = vpack.c.b16 %v580, %v578
    %v617 = vpack.c.b16 %v583, %v581
    %v618 = vpack.c.b16 %v584, %v582
    %v619 = vpack.c.b16 %v587, %v585
    %v620 = vpack.c.b16 %v588, %v586
    %653 = vmatpush.bf16.msra.mxu0 %v603
    %654 = vmatpush.bf16.msra.mxu0 %v601
    %655 = vmatpush.bf16.msra.mxu0 %v599
    %656 = vmatpush.bf16.msra.mxu0 %v597
    %657 = vmatpush.bf16.msra.mxu0 %v595
    %658 = vmatpush.bf16.msra.mxu0 %v593
    %659 = vmatpush.bf16.msra.mxu0 %v591
    %660 = vmatpush.bf16.msra.mxu0 %v589
    %661 = vmatmul.bf16.gmra.mxu0 %v489
    %v662 = vpop.f32.mrf.mxu0
    %v663 = vadd.f32 %v479, %v662
    %v664 = vpop.f32.mrf.mxu0
    %v665 = vadd.f32 %v479, %v664
    %666 = vdwg.mxu0
    %667 = vmatpush.bf16.msra.mxu0 %v619
    %668 = vmatpush.bf16.msra.mxu0 %v617
    %669 = vmatpush.bf16.msra.mxu0 %v615
    %670 = vmatpush.bf16.msra.mxu0 %v613
    %671 = vmatpush.bf16.msra.mxu0 %v611
    %672 = vmatpush.bf16.msra.mxu0 %v609
    %673 = vmatpush.bf16.msra.mxu0 %v607
    %674 = vmatpush.bf16.msra.mxu0 %v605
    %675 = vmatmul.bf16.gmra.mxu0 %v490
    %v676 = vpop.f32.mrf.mxu0
    %v677 = vadd.f32 %v663, %v676
    %v678 = vpop.f32.mrf.mxu0
    %v679 = vadd.f32 %v665, %v678
    %680 = vdwg.mxu0
    %681 = vmatpush.bf16.msra.mxu0 %v604
    %682 = vmatpush.bf16.msra.mxu0 %v602
    %683 = vmatpush.bf16.msra.mxu0 %v600
    %684 = vmatpush.bf16.msra.mxu0 %v598
    %685 = vmatpush.bf16.msra.mxu0 %v596
    %686 = vmatpush.bf16.msra.mxu0 %v594
    %687 = vmatpush.bf16.msra.mxu0 %v592
    %688 = vmatpush.bf16.msra.mxu0 %v590
    %689 = vmatmul.bf16.gmra.mxu0 %v489
    %v690 = vpop.f32.mrf.mxu0
    %v691 = vadd.f32 %v480, %v690
    %v692 = vpop.f32.mrf.mxu0
    %v693 = vadd.f32 %v480, %v692
    %694 = vdwg.mxu0
    %695 = vmatpush.bf16.msra.mxu0 %v620
    %696 = vmatpush.bf16.msra.mxu0 %v618
    %697 = vmatpush.bf16.msra.mxu0 %v616
    %698 = vmatpush.bf16.msra.mxu0 %v614
    %699 = vmatpush.bf16.msra.mxu0 %v612
    %700 = vmatpush.bf16.msra.mxu0 %v610
    %701 = vmatpush.bf16.msra.mxu0 %v608
    %702 = vmatpush.bf16.msra.mxu0 %v606
    %703 = vmatmul.bf16.gmra.mxu0 %v490
    %v704 = vpop.f32.mrf.mxu0
    %v705 = vadd.f32 %v691, %v704
    %v706 = vpop.f32.mrf.mxu0
    %v707 = vadd.f32 %v693, %v706
    %708 = vdwg.mxu0
    %v709 = vmax.f32 %v677, 0.0
    %v710 = vmax.f32 %v705, 0.0
    %v711 = vmax.f32 %v679, 0.0
    %v712 = vmax.f32 %v707, 0.0
    %v713 = vld [vmem:[%s7] sm:$0x3]
    %v715 = vperm.slane %v713, 0
    %v716 = vperm.slane %v713, 1
    %v719 = vmul.f32 %v709, %v715
    %v720 = vmul.f32 %v710, %v716
    %v721 = vmul.f32 %v711, %v715
    %v722 = vmul.f32 %v712, %v716
    %v723 = vadd.f32 %v719, %v720
    %724 = vadd.xlane.f32.xlu0 %v723
    %v725 = vpop.xlane.xlu0 %724
    %v726 = vadd.f32 %v721, %v722
    %727 = vadd.xlane.f32.xlu0 %v726
    %v728 = vpop.xlane.xlu0 %727
    %v729 = vld [vmem:[#allocation2] sm:$0x1]
    %v731 = vperm.slane %v729, 0
    %v733 = vadd.f32 %v725, %v731
    %v734 = vadd.f32 %v728, %v731
    %v735 = vxor.u32 %v733, 2147483648
    %v736 = vxor.u32 %v734, 2147483648
    %v737 = vmul.f32 %v735, 1.442695
    %v738 = vpow.pop %v737
    %v739 = vmul.f32 %v736, 1.442695
    %v740 = vpow.pop %v739
    %v741 = vadd.f32 %v738, 1.0
    %v742 = vadd.f32 %v740, 1.0
    %v743 = vrcp.pop %v741
    %v744 = vmul.f32 %v741, %v743
    %v745 = vsub.f32 1.0, %v744
    %v746 = vmul.f32 %v743, %v745
    %v747 = vadd.f32 %v743, %v746
    %vm748 = vweird.f32 %v741
    %vm749 = vweird.f32 %v743
    %vm750 = vmor %vm748, %vm749
    %v751 = vsel %vm750, %v743, %v747
    %v752 = vand.u32 2147483647, %v741
    %vm753 = vcmp.eq.f32.partialorder %v752, 8.507059e+37
    %v754 = vand.u32 %v741, 2147483648
    %v755 = vor.u32 1.1754944e-38, %v754
    %v756 = vsel %vm753, %v755, %v751
    %v757 = vmul.f32 1.0, %v756
    %v758 = vrcp.pop %v742
    %v759 = vmul.f32 %v742, %v758
    %v760 = vsub.f32 1.0, %v759
    %v761 = vmul.f32 %v758, %v760
    %v762 = vadd.f32 %v758, %v761
    %vm763 = vweird.f32 %v742
    %vm764 = vweird.f32 %v758
    %vm765 = vmor %vm763, %vm764
    %v766 = vsel %vm765, %v758, %v762
    %v767 = vand.u32 2147483647, %v742
    %vm768 = vcmp.eq.f32.partialorder %v767, 8.507059e+37
    %v769 = vand.u32 %v742, 2147483648
    %v770 = vor.u32 1.1754944e-38, %v769
    %v771 = vsel %vm768, %v770, %v766
    %v772 = vmul.f32 1.0, %v771
    %vm773 = vcmask 7168
    %774 = vst.msk [vmem:[%s9] sm:$0xff] %vm773, %v757
    %775 = vst.msk [vmem:[%s9 + $0x8] sm:$0xff] %vm773, %v772
    %776 = vst [vmem:[#allocation11] sm:$0xff] %v443
    %777 = vst [vmem:[#allocation11 + $0x8] sm:$0xff] %v444
    // Predicated region
    $region54: #{tpu_custom_call.1} parent=1 // pred_check
      _
    $region55: #{tpu_custom_call.1} parent=1 // pred_check_branch
      %779 = sbr.rel (0) target = $region57
    $region56: #{tpu_custom_call.1} parent=1 // pred_region
      _
    $region57: #{tpu_custom_call.1} parent=1 // pred_fallthru
      _
    // Predicated region
    $region58: #{tpu_custom_call.1} parent=1 // pred_check
      _
    $region59: #{tpu_custom_call.1} parent=1 // pred_check_branch
      %781 = sbr.rel (0) target = $region61
    $region60: #{tpu_custom_call.1} parent=1 // pred_region
      %783 = vsyncadd [#allocation5], 0
      %s784 = sshll.u32 [#allocation11], 4
      %s785 = int_to_ptr.vmem [resolvable:$true] %s784
      %s786 = sshll.u32 %s10, 4
      %s787 = int_to_ptr.hbm [resolvable:$true] %s786
      %792 = dma.vmem_to_hbm [thread:$0]  %s785, 256, %s787, [#allocation5], 128, 128, 8
    $region61: #{tpu_custom_call.1} parent=1 // pred_fallthru
      _
    // Predicated region
    $region62: #{tpu_custom_call.1} parent=1 // pred_check
      _
    $region63: #{tpu_custom_call.1} parent=1 // pred_check_branch
      %794 = sbr.rel (0) target = $region65
    $region64: #{tpu_custom_call.1} parent=1 // pred_region
      _
    $region65: #{tpu_custom_call.1} parent=1 // pred_fallthru
      _
    // Predicated region
    $region66: #{tpu_custom_call.1} parent=1 // pred_check
      _
    $region67: #{tpu_custom_call.1} parent=1 // pred_check_branch
      %796 = sbr.rel (0) target = $region69
    $region68: #{tpu_custom_call.1} parent=1 // pred_region
      %798 = dma.done [#allocation5], 256
    $region69: #{tpu_custom_call.1} parent=1 // pred_fallthru
      _
    %799 = vsyncpa [#allocation4], 1
    %800 = vsyncpa [#allocation7], 1
    %801 = vsyncpa [#allocation10], 1
    %802 = vsyncpa [#allocation5], 1

</llo_original>
